<compile_context>
chip_gen: v7x
topology: tpu7x:2x2x1
jax: 0.10.0
libtpu: 0.0.40
codegen_flags: <defaults>
</compile_context>

<pallas_src>
import functools
from typing import NamedTuple

import jax
import jax.numpy as jnp
from jax.experimental import pallas as pl
from jax.experimental.pallas import tpu as pltpu


def _round_up(x, m):
    return ((x + m - 1) // m) * m


# ----------------------------------------------------------------------------
# Kernel
# ----------------------------------------------------------------------------
def _mlp_kernel(x_ref, w1_ref, b1_ref, w2_ref, b2_ref, o_ref):
    # fc1: [TILE_B, in_p] @ [in_p, hid_p] on the MXU, f32 accumulation.
    h = jnp.dot(x_ref[...], w1_ref[...], preferred_element_type=jnp.float32)
    # Bias add + ReLU in f32 (biases are (1, hid_p) rows, sublane-broadcast).
    h = jnp.maximum(h + b1_ref[...], 0.0)
    # fc2: cast activations to the matmul dtype (bf16 or f32); f32 accumulate.
    h = h.astype(w2_ref.dtype)
    out = jnp.dot(h, w2_ref[...], preferred_element_type=jnp.float32)
    o_ref[...] = (out + b2_ref[...]).astype(o_ref.dtype)


# ----------------------------------------------------------------------------
# Spec helpers
# ----------------------------------------------------------------------------
def _pinned_spec(block_shape, single_buffer):
    """BlockSpec for a weight/bias kept VMEM-resident across all grid steps.

    The index_map is constant so the operand is only DMA'd once; with
    single_buffer we request a 1-deep pipeline buffer to halve its VMEM cost.
    Falls back to the default (double-buffered) spec on older Pallas versions.
    """
    index_map = lambda i: (0,) * len(block_shape)
    if single_buffer and hasattr(pl, "Buffered"):
        try:
            return pl.BlockSpec(block_shape, index_map,
                                pipeline_mode=pl.Buffered(1))
        except (TypeError, ValueError):
            pass
    return pl.BlockSpec(block_shape, index_map)


# ----------------------------------------------------------------------------
# Parameter preparation (pad/cast ONCE, reuse across forward calls)
# ----------------------------------------------------------------------------
class NeuralNet2Params(NamedTuple):
    w1_p: jax.Array   # [in_p, hid_p]   matmul dtype
    b1_p: jax.Array   # [1, hid_p]      f32
    w2_p: jax.Array   # [hid_p, cls_p]  matmul dtype
    b2_p: jax.Array   # [1, cls_p]      f32
    num_classes: int  # original (un-padded) output width


def _resolve_matmul_dtype(matmul_dtype, param_dtype):
    if matmul_dtype is None or matmul_dtype == "auto":
        # bf16 matmul inputs (with f32 accumulation + f32 bias/ReLU epilogue)
        # are the MXU-native fast path on v5e/v6e/v7x and halve DMA/VMEM bytes.
        if jnp.dtype(param_dtype).itemsize <= 2:
            return jnp.dtype(param_dtype)
        return jnp.dtype(jnp.bfloat16)
    return jnp.dtype(matmul_dtype)


def prepare_params(w1, b1, w2, b2, *, matmul_dtype="auto"):
    """Pad weights/biases to (8,128)-aligned shapes and cast once.

    w1: [input_size, hidden]   b1: [hidden] or [1, hidden]
    w2: [hidden, num_classes]  b2: [num_classes] or [1, num_classes]
    (w1/w2 are transposed relative to PyTorch nn.Linear's [out, in] layout.)
    """
    in_size, hidden = w1.shape
    hidden2, num_classes = w2.shape
    assert hidden == hidden2, "w1/w2 hidden dims must match"
    md = _resolve_matmul_dtype(matmul_dtype, w1.dtype)

    in_p = _round_up(in_size, 128)
    hid_p = _round_up(hidden, 128)
    cls_p = _round_up(num_classes, 128)

    w1_p = jnp.pad(w1.astype(md), ((0, in_p - in_size), (0, hid_p - hidden)))
    w2_p = jnp.pad(w2.astype(md), ((0, hid_p - hidden), (0, cls_p - num_classes)))
    b1_p = jnp.pad(jnp.asarray(b1, jnp.float32).reshape(1, -1),
                   ((0, 0), (0, hid_p - hidden)))
    b2_p = jnp.pad(jnp.asarray(b2, jnp.float32).reshape(1, -1),
                   ((0, 0), (0, cls_p - num_classes)))
    return NeuralNet2Params(w1_p, b1_p, w2_p, b2_p, num_classes)


# ----------------------------------------------------------------------------
# Forward
# ----------------------------------------------------------------------------
@functools.partial(jax.jit,
                   static_argnames=("num_classes", "tile_b", "buffered_pins"))
def _forward_impl(x, w1_p, b1_p, w2_p, b2_p, *, num_classes, tile_b,
                  buffered_pins):
    B, in_size = x.shape
    in_p, hid_p = w1_p.shape
    cls_p = w2_p.shape[1]
    md = w1_p.dtype
    out_dtype = x.dtype

    # Large tiles amortize the ~0.35us/step grid overhead, but cap so the grid
    # has >= 2 steps whenever B > 8 (both v7x TensorCores get work).
    tb = max(8, min(_round_up(tile_b, 8), _round_up(-(-B // 2), 8)))
    b_p = _round_up(B, tb)
    grid = (b_p // tb,)

    # Pad / cast x only when actually needed (skip the extra HBM round-trip
    # for already-aligned, already-typed inputs).
    if (b_p, in_p) != (B, in_size) or x.dtype != md:
        x_p = jnp.pad(x.astype(md), ((0, b_p - B), (0, in_p - in_size)))
    else:
        x_p = x

    itemsize = jnp.dtype(md).itemsize
    out_itemsize = jnp.dtype(out_dtype).itemsize
    w_bufs = 1 if buffered_pins else 2
    vmem_bytes = (
        w_bufs * (in_p * hid_p + hid_p * cls_p) * itemsize   # resident weights
        + w_bufs * 8 * (hid_p + cls_p) * 4                   # bias rows (f32)
        + 2 * tb * in_p * itemsize                            # x tile (x2 bufs)
        + 2 * tb * cls_p * out_itemsize                       # out tile (x2 bufs)
        + tb * (hid_p + cls_p) * 4                            # f32 intermediates
    )
    vmem_limit = int(min(128 * 1024 * 1024,
                         max(int(vmem_bytes * 1.3), 32 * 1024 * 1024)))

    cost = pl.CostEstimate(
        flops=2 * b_p * (in_p * hid_p + hid_p * cls_p),
        transcendentals=0,
        bytes_accessed=(b_p * in_p * itemsize
                        + (in_p * hid_p + hid_p * cls_p) * itemsize
                        + (hid_p + cls_p) * 4
                        + b_p * cls_p * out_itemsize),
    )

    out_p = pl.pallas_call(
        _mlp_kernel,
        out_shape=jax.ShapeDtypeStruct((b_p, cls_p), out_dtype),
        grid=grid,
        in_specs=[
            # Batch-tiled activations: new block each grid step.
            pl.BlockSpec((tb, in_p), lambda i: (i, 0)),
            # Weights & biases pinned (single-buffered) -> VMEM-resident.
            _pinned_spec((in_p, hid_p), buffered_pins),
            _pinned_spec((1, hid_p), buffered_pins),
            _pinned_spec((hid_p, cls_p), buffered_pins),
            _pinned_spec((1, cls_p), buffered_pins),
        ],
        out_specs=pl.BlockSpec((tb, cls_p), lambda i: (i, 0)),
        compiler_params=pltpu.CompilerParams(
            dimension_semantics=("parallel",),
            vmem_limit_bytes=vmem_limit),
        cost_estimate=cost,
    )(x_p, w1_p, b1_p, w2_p, b2_p)

    # Strip the zero padding added for alignment.
    return out_p[:B, :num_classes]


_BUFFERED_PINS_OK = [True]  # set to False once if Buffered(1) pins fail to lower


def neural_net2_forward(x, params, *, tile_b=512):
    """Forward pass of NeuralNet2: fc2(relu(fc1(x))).

    x      : [B, input_size]
    params : NeuralNet2Params from prepare_params (preferred — pad/cast once),
             or a raw (w1, b1, w2, b2) tuple.
    returns [B, num_classes] in x.dtype.
    """
    if not isinstance(params, NeuralNet2Params):
        params = prepare_params(*params)
    args = (x, params.w1_p, params.b1_p, params.w2_p, params.b2_p)
    kwargs = dict(num_classes=params.num_classes, tile_b=tile_b)
    if _BUFFERED_PINS_OK[0]:
        try:
            return _forward_impl(*args, buffered_pins=True, **kwargs)
        except Exception:
            # Older / stricter Pallas: fall back to default double-buffered pins.
            _BUFFERED_PINS_OK[0] = False
    return _forward_impl(*args, buffered_pins=False, **kwargs)


# ----------------------------------------------------------------------------
# Init (mimics PyTorch nn.Linear default U(-1/sqrt(fan_in), 1/sqrt(fan_in)))
# ----------------------------------------------------------------------------
def init_params(key, input_size, hidden_size, num_classes, dtype=jnp.float32):
    k1, k2, k3, k4 = jax.random.split(key, 4)
    bound1 = 1.0 / (input_size ** 0.5)
    bound2 = 1.0 / (hidden_size ** 0.5)
    w1 = jax.random.uniform(k1, (input_size, hidden_size), dtype,
                            minval=-bound1, maxval=bound1)
    b1 = jax.random.uniform(k2, (hidden_size,), dtype,
                            minval=-bound1, maxval=bound1)
    w2 = jax.random.uniform(k3, (hidden_size, num_classes), dtype,
                            minval=-bound2, maxval=bound2)
    b2 = jax.random.uniform(k4, (num_classes,), dtype,
                            minval=-bound2, maxval=bound2)
    return w1, b1, w2, b2


if __name__ == "__main__":
    batch = 24          # -> tile_b capped to 16, 2 grid steps (exercises tiling)
    input_size = 32
    hidden_size = 64
    num_classes = 16

    key = jax.random.PRNGKey(0)
    kx, kp = jax.random.split(key)
    x = jax.random.normal(kx, (batch, input_size), jnp.float32)
    w1, b1, w2, b2 = init_params(kp, input_size, hidden_size, num_classes)

    # Reference (same semantics as the PyTorch module).
    ref = jnp.maximum(x @ w1 + b1[None, :], 0.0) @ w2 + b2[None, :]

    # f32-matmul path: tight-tolerance correctness check.
    p_f32 = prepare_params(w1, b1, w2, b2, matmul_dtype=jnp.float32)
    out_f32 = jax.block_until_ready(neural_net2_forward(x, p_f32))
    assert out_f32.shape == (batch, num_classes)
    assert jnp.allclose(out_f32, ref, atol=1e-5, rtol=1e-5)

    # Default fast path: bf16 matmul inputs, f32 accumulation/epilogue.
    # prepare_params is called once and the padded/cast weights are reused.
    p_fast = prepare_params(w1, b1, w2, b2)          # matmul_dtype="auto" -> bf16
    out_fast = neural_net2_forward(x, p_fast)        # first call compiles
    out_fast = jax.block_until_ready(neural_net2_forward(x, p_fast))
    assert out_fast.shape == (batch, num_classes)
    assert jnp.allclose(out_fast, ref, atol=3e-2, rtol=3e-2)

    print("KERNEL_OK")
</pallas_src>

<mosaic_0001>
module attributes {stable_mosaic.version = 11 : i64} {
  func.func @_mlp_kernel(%arg0: i32, %arg1: memref<16x128xf32, #tpu.memory_space<vmem>>, %arg2: memref<128x128xf32, #tpu.memory_space<vmem>>, %arg3: memref<1x128xf32, #tpu.memory_space<vmem>>, %arg4: memref<128x128xf32, #tpu.memory_space<vmem>>, %arg5: memref<1x128xf32, #tpu.memory_space<vmem>>, %arg6: memref<16x128xf32, #tpu.memory_space<vmem>>) attributes {dimension_semantics = [#tpu.dimension_semantics<parallel>], iteration_bounds = array<i64: 2>, scalar_prefetch = 0 : i64, scratch_operands = 0 : i64, tpu.core_type = #tpu.core_type<tc>, window_params = [{transform_indices = @transform_0, window_bounds = array<i64: 16, 128>}, {pipeline_mode = #tpu.pipeline_mode<synchronous>, transform_indices = @transform_1, window_bounds = array<i64: 128, 128>}, {pipeline_mode = #tpu.pipeline_mode<synchronous>, transform_indices = @transform_2, window_bounds = array<i64: 1, 128>}, {pipeline_mode = #tpu.pipeline_mode<synchronous>, transform_indices = @transform_3, window_bounds = array<i64: 128, 128>}, {pipeline_mode = #tpu.pipeline_mode<synchronous>, transform_indices = @transform_4, window_bounds = array<i64: 1, 128>}, {transform_indices = @transform_5, window_bounds = array<i64: 16, 128>}]} {
    %c0 = arith.constant 0 : index
    %c0_0 = arith.constant 0 : index
    %0 = vector.load %arg1[%c0, %c0_0] : memref<16x128xf32, #tpu.memory_space<vmem>>, vector<16x128xf32>
    %c0_1 = arith.constant 0 : index
    %c0_2 = arith.constant 0 : index
    %1 = vector.load %arg2[%c0_1, %c0_2] : memref<128x128xf32, #tpu.memory_space<vmem>>, vector<128x128xf32>
    %cst = arith.constant dense<0.000000e+00> : vector<16x128xf32>
    %2 = tpu.matmul %0, %1, %cst {dimension_numbers = #tpu.dot_dimension_numbers<[1], [0], [0], [1], [0, 0, 1, 1], [], []>} : vector<16x128xf32>, vector<128x128xf32>, vector<16x128xf32> -> vector<16x128xf32>
    %c0_3 = arith.constant 0 : index
    %c0_4 = arith.constant 0 : index
    %3 = vector.load %arg3[%c0_3, %c0_4] : memref<1x128xf32, #tpu.memory_space<vmem>>, vector<1x128xf32>
    %4 = vector.broadcast %3 : vector<1x128xf32> to vector<16x128xf32>
    %5 = arith.addf %2, %4 : vector<16x128xf32>
    %cst_5 = arith.constant 0.000000e+00 : f32
    %6 = vector.broadcast %cst_5 : f32 to vector<16x128xf32>
    %7 = arith.maximumf %5, %6 : vector<16x128xf32>
    %c0_6 = arith.constant 0 : index
    %c0_7 = arith.constant 0 : index
    %8 = vector.load %arg4[%c0_6, %c0_7] : memref<128x128xf32, #tpu.memory_space<vmem>>, vector<128x128xf32>
    %cst_8 = arith.constant dense<0.000000e+00> : vector<16x128xf32>
    %9 = tpu.matmul %7, %8, %cst_8 {dimension_numbers = #tpu.dot_dimension_numbers<[1], [0], [0], [1], [0, 0, 1, 1], [], []>} : vector<16x128xf32>, vector<128x128xf32>, vector<16x128xf32> -> vector<16x128xf32>
    %c0_9 = arith.constant 0 : index
    %c0_10 = arith.constant 0 : index
    %10 = vector.load %arg5[%c0_9, %c0_10] : memref<1x128xf32, #tpu.memory_space<vmem>>, vector<1x128xf32>
    %11 = vector.broadcast %10 : vector<1x128xf32> to vector<16x128xf32>
    %12 = arith.addf %9, %11 : vector<16x128xf32>
    %c0_11 = arith.constant 0 : index
    %c0_12 = arith.constant 0 : index
    %13 = vector.load %arg6[%c0_11, %c0_12] : memref<16x128xf32, #tpu.memory_space<vmem>>, vector<16x128xf32>
    tpu.vector_store %arg6[%c0_11, %c0_12], %12 {strides = array<i32>} : memref<16x128xf32, #tpu.memory_space<vmem>>, vector<16x128xf32>,
    return
  }
  func.func @transform_0(%arg0: i32) -> (i32, i32) {
    %c0_i32 = arith.constant 0 : i32
    %c0_i32_0 = arith.constant 0 : i32
    return %arg0, %c0_i32 : i32, i32
  }
  func.func @transform_1(%arg0: i32) -> (i32, i32) {
    %c0_i32 = arith.constant 0 : i32
    %c0_i32_0 = arith.constant 0 : i32
    %c0_i32_1 = arith.constant 0 : i32
    return %c0_i32, %c0_i32_0 : i32, i32
  }
  func.func @transform_2(%arg0: i32) -> (i32, i32) {
    %c0_i32 = arith.constant 0 : i32
    %c0_i32_0 = arith.constant 0 : i32
    %c0_i32_1 = arith.constant 0 : i32
    return %c0_i32, %c0_i32_0 : i32, i32
  }
  func.func @transform_3(%arg0: i32) -> (i32, i32) {
    %c0_i32 = arith.constant 0 : i32
    %c0_i32_0 = arith.constant 0 : i32
    %c0_i32_1 = arith.constant 0 : i32
    return %c0_i32, %c0_i32_0 : i32, i32
  }
  func.func @transform_4(%arg0: i32) -> (i32, i32) {
    %c0_i32 = arith.constant 0 : i32
    %c0_i32_0 = arith.constant 0 : i32
    %c0_i32_1 = arith.constant 0 : i32
    return %c0_i32, %c0_i32_0 : i32, i32
  }
  func.func @transform_5(%arg0: i32) -> (i32, i32) {
    %c0_i32 = arith.constant 0 : i32
    %c0_i32_0 = arith.constant 0 : i32
    return %arg0, %c0_i32 : i32, i32
  }
}

module attributes {stable_mosaic.version = 11 : i64} {
  func.func @_mlp_kernel(%arg0: i32, %arg1: memref<16x128xf32, #tpu.memory_space<vmem>>, %arg2: memref<128x128xf32, #tpu.memory_space<vmem>>, %arg3: memref<1x128xf32, #tpu.memory_space<vmem>>, %arg4: memref<128x128xf32, #tpu.memory_space<vmem>>, %arg5: memref<1x128xf32, #tpu.memory_space<vmem>>, %arg6: memref<16x128xf32, #tpu.memory_space<vmem>>) attributes {dimension_semantics = [#tpu.dimension_semantics<parallel>], iteration_bounds = array<i64: 2>, scalar_prefetch = 0 : i64, scratch_operands = 0 : i64, tpu.core_type = #tpu.core_type<tc>, window_params = [{transform_indices = @transform_0, window_bounds = array<i64: 16, 128>}, {pipeline_mode = #tpu.pipeline_mode<synchronous>, transform_indices = @transform_1, window_bounds = array<i64: 128, 128>}, {pipeline_mode = #tpu.pipeline_mode<synchronous>, transform_indices = @transform_2, window_bounds = array<i64: 1, 128>}, {pipeline_mode = #tpu.pipeline_mode<synchronous>, transform_indices = @transform_3, window_bounds = array<i64: 128, 128>}, {pipeline_mode = #tpu.pipeline_mode<synchronous>, transform_indices = @transform_4, window_bounds = array<i64: 1, 128>}, {transform_indices = @transform_5, window_bounds = array<i64: 16, 128>}]} {
    %c0 = arith.constant 0 : index
    %c0_0 = arith.constant 0 : index
    %0 = vector.load %arg1[%c0, %c0_0] : memref<16x128xf32, #tpu.memory_space<vmem>>, vector<16x128xf32>
    %c0_1 = arith.constant 0 : index
    %c0_2 = arith.constant 0 : index
    %1 = vector.load %arg2[%c0_1, %c0_2] : memref<128x128xf32, #tpu.memory_space<vmem>>, vector<128x128xf32>
    %cst = arith.constant dense<0.000000e+00> : vector<16x128xf32>
    %2 = tpu.matmul %0, %1, %cst {dimension_numbers = #tpu.dot_dimension_numbers<[1], [0], [0], [1], [0, 0, 1, 1], [], []>} : vector<16x128xf32>, vector<128x128xf32>, vector<16x128xf32> -> vector<16x128xf32>
    %c0_3 = arith.constant 0 : index
    %c0_4 = arith.constant 0 : index
    %3 = vector.load %arg3[%c0_3, %c0_4] : memref<1x128xf32, #tpu.memory_space<vmem>>, vector<1x128xf32>
    %4 = vector.broadcast %3 : vector<1x128xf32> to vector<16x128xf32>
    %5 = arith.addf %2, %4 : vector<16x128xf32>
    %cst_5 = arith.constant 0.000000e+00 : f32
    %6 = vector.broadcast %cst_5 : f32 to vector<16x128xf32>
    %7 = arith.maximumf %5, %6 : vector<16x128xf32>
    %c0_6 = arith.constant 0 : index
    %c0_7 = arith.constant 0 : index
    %8 = vector.load %arg4[%c0_6, %c0_7] : memref<128x128xf32, #tpu.memory_space<vmem>>, vector<128x128xf32>
    %cst_8 = arith.constant dense<0.000000e+00> : vector<16x128xf32>
    %9 = tpu.matmul %7, %8, %cst_8 {dimension_numbers = #tpu.dot_dimension_numbers<[1], [0], [0], [1], [0, 0, 1, 1], [], []>} : vector<16x128xf32>, vector<128x128xf32>, vector<16x128xf32> -> vector<16x128xf32>
    %c0_9 = arith.constant 0 : index
    %c0_10 = arith.constant 0 : index
    %10 = vector.load %arg5[%c0_9, %c0_10] : memref<1x128xf32, #tpu.memory_space<vmem>>, vector<1x128xf32>
    %11 = vector.broadcast %10 : vector<1x128xf32> to vector<16x128xf32>
    %12 = arith.addf %9, %11 : vector<16x128xf32>
    %c0_11 = arith.constant 0 : index
    %c0_12 = arith.constant 0 : index
    %13 = vector.load %arg6[%c0_11, %c0_12] : memref<16x128xf32, #tpu.memory_space<vmem>>, vector<16x128xf32>
    tpu.vector_store %arg6[%c0_11, %c0_12], %12 {strides = array<i32>} : memref<16x128xf32, #tpu.memory_space<vmem>>, vector<16x128xf32>,
    return
  }
  func.func @transform_0(%arg0: i32) -> (i32, i32) {
    %c0_i32 = arith.constant 0 : i32
    %c0_i32_0 = arith.constant 0 : i32
    return %arg0, %c0_i32 : i32, i32
  }
  func.func @transform_1(%arg0: i32) -> (i32, i32) {
    %c0_i32 = arith.constant 0 : i32
    %c0_i32_0 = arith.constant 0 : i32
    %c0_i32_1 = arith.constant 0 : i32
    return %c0_i32, %c0_i32_0 : i32, i32
  }
  func.func @transform_2(%arg0: i32) -> (i32, i32) {
    %c0_i32 = arith.constant 0 : i32
    %c0_i32_0 = arith.constant 0 : i32
    %c0_i32_1 = arith.constant 0 : i32
    return %c0_i32, %c0_i32_0 : i32, i32
  }
  func.func @transform_3(%arg0: i32) -> (i32, i32) {
    %c0_i32 = arith.constant 0 : i32
    %c0_i32_0 = arith.constant 0 : i32
    %c0_i32_1 = arith.constant 0 : i32
    return %c0_i32, %c0_i32_0 : i32, i32
  }
  func.func @transform_4(%arg0: i32) -> (i32, i32) {
    %c0_i32 = arith.constant 0 : i32
    %c0_i32_0 = arith.constant 0 : i32
    %c0_i32_1 = arith.constant 0 : i32
    return %c0_i32, %c0_i32_0 : i32, i32
  }
  func.func @transform_5(%arg0: i32) -> (i32, i32) {
    %c0_i32 = arith.constant 0 : i32
    %c0_i32_0 = arith.constant 0 : i32
    return %arg0, %c0_i32 : i32, i32
  }
}

</mosaic_0001>

<llo_original>
// kernel: _forward_impl.1
$region0: #{_forward_impl.1}
  #allocation0 [shape = 'u32[]', space=smem, size = 0x4, offset = 0x4, fixed_abs, tag = 'smem constant byte address 0x4 - core index']
  #allocation1 [shape = 'u32[144,128]{1,0:T(1,128)}', space=vmem, size = 0x12000, scoped, tag = 'internal scratch']
  %s0 = inlined_call_operand.vmem [shape: f32[32,128], index: 0, kind: input, shape index: {}]
  %s1 = inlined_call_operand.hbm [shape: f32[128,128], index: 1, kind: input, shape index: {}]
  %s2 = inlined_call_operand.vmem [shape: f32[1,128], index: 2, kind: input, shape index: {}]
  %s3 = inlined_call_operand.hbm [shape: f32[128,128], index: 3, kind: input, shape index: {}]
  %s4 = inlined_call_operand.vmem [shape: f32[1,128], index: 4, kind: input, shape index: {}]
  %s5 = inlined_call_operand.vmem [shape: f32[32,128], index: 5, kind: output, shape index: {}]
  %s6 = sld [smem:[#allocation0]]
  $region61: #{_forward_impl.1} parent=0
    _
  %s8 = ssub.s32 1, %s6
  %s9 = scalar_select 0, %s8, %s6
  $region1: #{_forward_impl.1} parent=0
    #allocation2 [shape = 'u8[65536]{0}', space=vmem, size = 0x10000, scoped, tag = 'input window, operand 1, single buffered']
    #allocation3 [shape = 's32[2]{0}', space=sflag, size = 0x8, scoped, tag = 'scoped memory for _forward_impl.1']
    #allocation4 [shape = 'u8[65536]{0}', space=vmem, size = 0x10000, scoped, tag = 'input window, operand 3, single buffered']
    #allocation5 [shape = 's32[1]{0}', space=sflag, size = 0x4, scoped, tag = 'scoped memory for _forward_impl.1']
    %10 = vsyncpa [#allocation3], 0
    %11 = vsyncpa [#allocation5], 0
    loop: start=0, step=1, limit=4
    $region2: #{_forward_impl.1} parent=1 // loop_pre_header
      _
    $region3: #{_forward_impl.1} parent=1 // loop_header
      %s13 = sphi 0, %s17
      %p14 = scmp.ge.s32.totalorder %s13, 4
      %s23 = sphi 0, %s25
      %s26 = sphi 0, %s23
      %s27 = sphi 0, %s26
      %s43 = sphi 0, %s27
      %s47 = sphi 0, %s47
      %s49 = sphi 0, %s47
      %s50 = sphi 0, %s49
      %s64 = sphi 0, %s50
      %s68 = sphi 0, %s68
      %s70 = sphi 0, %s68
      %s71 = sphi 0, %s70
      %s85 = sphi 0, %s71
      %s89 = sphi 0, %s89
      %s91 = sphi 0, %s89
      %s92 = sphi 0, %s91
      %s106 = sphi 0, %s92
      %s110 = sphi 0, %s110
      %s112 = sphi 0, %s110
      %s113 = sphi 0, %s112
      %s127 = sphi 0, %s113
      %s133 = sphi 0, %s135
      %s136 = sphi 0, %s133
      %s137 = sphi 0, %s136
      %s153 = sphi 0, %s137
    $region4: #{_forward_impl.1} parent=1 // loop_header_branch
      %16 = sbr.rel (%p14) target = $region8
    $region5: #{_forward_impl.1} parent=1 // loop_body
      %s18 = ssub.s32 %s13, 1
      %s19 = ssub.s32 %s13, 2
      %s20 = sadd.s32 %s13, 1
      %s21 = ssub.s32 %s13, %s20
      %p22 = scmp.eq.s32.totalorder %s21, 0
      %s24 = sadd.s32 %s23, 1
      %s25 = scalar_select %p22, %s23, %s24
      %p28 = pneg %p22
      %p29 = scmp.eq.s32.totalorder %s13, 1
      %p30 = por %p28, %p29
      %p31 = scmp.ne.s32.totalorder %s23, %s26
      %p32 = scmp.eq.s32.totalorder %s13, 0
      %p33 = por %p31, %p32
      %p34 = scmp.ne.s32.totalorder %s23, %s26
      %p35 = scmp.eq.s32.totalorder %s18, 1
      %p36 = por %p34, %p35
      %p37 = scmp.ne.s32.totalorder %s26, %s27
      %p38 = scmp.eq.s32.totalorder %s18, 0
      %p39 = por %p37, %p38
      %p40 = scmp.ne.s32.totalorder %s26, %s27
      %p41 = scmp.eq.s32.totalorder %s19, 1
      %p42 = por %p40, %p41
      %p44 = scmp.ne.s32.totalorder %s27, %s43
      %p45 = scmp.eq.s32.totalorder %s19, 0
      %p46 = por %p44, %p45
      %s48 = sadd.s32 %s47, 1
      %p51 = scmp.eq.s32.totalorder %s13, 1
      %p52 = scmp.ne.s32.totalorder %s47, %s49
      %p53 = scmp.eq.s32.totalorder %s13, 0
      %p54 = por %p52, %p53
      %p55 = scmp.ne.s32.totalorder %s47, %s49
      %p56 = scmp.eq.s32.totalorder %s18, 1
      %p57 = por %p55, %p56
      %p58 = scmp.ne.s32.totalorder %s49, %s50
      %p59 = scmp.eq.s32.totalorder %s18, 0
      %p60 = por %p58, %p59
      %p61 = scmp.ne.s32.totalorder %s49, %s50
      %p62 = scmp.eq.s32.totalorder %s19, 1
      %p63 = por %p61, %p62
      %p65 = scmp.ne.s32.totalorder %s50, %s64
      %p66 = scmp.eq.s32.totalorder %s19, 0
      %p67 = por %p65, %p66
      %s69 = sadd.s32 %s68, 1
      %p72 = scmp.eq.s32.totalorder %s13, 1
      %p73 = scmp.ne.s32.totalorder %s68, %s70
      %p74 = scmp.eq.s32.totalorder %s13, 0
      %p75 = por %p73, %p74
      %p76 = scmp.ne.s32.totalorder %s68, %s70
      %p77 = scmp.eq.s32.totalorder %s18, 1
      %p78 = por %p76, %p77
      %p79 = scmp.ne.s32.totalorder %s70, %s71
      %p80 = scmp.eq.s32.totalorder %s18, 0
      %p81 = por %p79, %p80
      %p82 = scmp.ne.s32.totalorder %s70, %s71
      %p83 = scmp.eq.s32.totalorder %s19, 1
      %p84 = por %p82, %p83
      %p86 = scmp.ne.s32.totalorder %s71, %s85
      %p87 = scmp.eq.s32.totalorder %s19, 0
      %p88 = por %p86, %p87
      %s90 = sadd.s32 %s89, 1
      %p93 = scmp.eq.s32.totalorder %s13, 1
      %p94 = scmp.ne.s32.totalorder %s89, %s91
      %p95 = scmp.eq.s32.totalorder %s13, 0
      %p96 = por %p94, %p95
      %p97 = scmp.ne.s32.totalorder %s89, %s91
      %p98 = scmp.eq.s32.totalorder %s18, 1
      %p99 = por %p97, %p98
      %p100 = scmp.ne.s32.totalorder %s91, %s92
      %p101 = scmp.eq.s32.totalorder %s18, 0
      %p102 = por %p100, %p101
      %p103 = scmp.ne.s32.totalorder %s91, %s92
      %p104 = scmp.eq.s32.totalorder %s19, 1
      %p105 = por %p103, %p104
      %p107 = scmp.ne.s32.totalorder %s92, %s106
      %p108 = scmp.eq.s32.totalorder %s19, 0
      %p109 = por %p107, %p108
      %s111 = sadd.s32 %s110, 1
      %p114 = scmp.eq.s32.totalorder %s13, 1
      %p115 = scmp.ne.s32.totalorder %s110, %s112
      %p116 = scmp.eq.s32.totalorder %s13, 0
      %p117 = por %p115, %p116
      %p118 = scmp.ne.s32.totalorder %s110, %s112
      %p119 = scmp.eq.s32.totalorder %s18, 1
      %p120 = por %p118, %p119
      %p121 = scmp.ne.s32.totalorder %s112, %s113
      %p122 = scmp.eq.s32.totalorder %s18, 0
      %p123 = por %p121, %p122
      %p124 = scmp.ne.s32.totalorder %s112, %s113
      %p125 = scmp.eq.s32.totalorder %s19, 1
      %p126 = por %p124, %p125
      %p128 = scmp.ne.s32.totalorder %s113, %s127
      %p129 = scmp.eq.s32.totalorder %s19, 0
      %p130 = por %p128, %p129
      %s131 = ssub.s32 %s13, %s20
      %p132 = scmp.eq.s32.totalorder %s131, 0
      %s134 = sadd.s32 %s133, 1
      %s135 = scalar_select %p132, %s133, %s134
      %p138 = pneg %p132
      %p139 = scmp.eq.s32.totalorder %s13, 1
      %p140 = por %p138, %p139
      %p141 = scmp.ne.s32.totalorder %s133, %s136
      %p142 = scmp.eq.s32.totalorder %s13, 0
      %p143 = por %p141, %p142
      %p144 = scmp.ne.s32.totalorder %s133, %s136
      %p145 = scmp.eq.s32.totalorder %s18, 1
      %p146 = por %p144, %p145
      %p147 = scmp.ne.s32.totalorder %s136, %s137
      %p148 = scmp.eq.s32.totalorder %s18, 0
      %p149 = por %p147, %p148
      %p150 = scmp.ne.s32.totalorder %s136, %s137
      %p151 = scmp.eq.s32.totalorder %s19, 1
      %p152 = por %p150, %p151
      %p154 = scmp.ne.s32.totalorder %s137, %s153
      %p155 = scmp.eq.s32.totalorder %s19, 0
      %p156 = por %p154, %p155
      %p157 = scmp.le.s32.totalorder 1, %s13
      %p158 = scmp.lt.s32.totalorder %s13, 3
      %p159 = pnand %p157, %p158
      %p160 = pneg %p159
      // Predicated region
      $region9: #{_forward_impl.1} parent=5 // pred_check
        _
      $region10: #{_forward_impl.1} parent=5 // pred_check_branch
        %162 = sbr.rel (%p159) target = $region12
      $region11: #{_forward_impl.1} parent=5 // pred_region
        %s163 = ssub.s32 %s13, 1
        // Predicated region
        $region13: #{_forward_impl.1} parent=11 // pred_check
          %p164 = pneg %p60
        $region14: #{_forward_impl.1} parent=11 // pred_check_branch
          %166 = sbr.rel (%p164) target = $region16
        $region15: #{_forward_impl.1} parent=11 // pred_region
          %s168 = ssub.s32 2048, 2048
          %169 = vsyncadd [#allocation3], %s168
          %s170 = sshll.u32 [#allocation2], 4
          %s171 = int_to_ptr.vmem [resolvable:$true] %s170
          %176 = dma.hbm_to_vmem [thread:$0]  %s1, 2048, %s171, [#allocation3], 128, 128, 8
        $region16: #{_forward_impl.1} parent=11 // pred_fallthru
          _
        // Predicated region
        $region17: #{_forward_impl.1} parent=11 // pred_check
          %p177 = pneg %p81
        $region18: #{_forward_impl.1} parent=11 // pred_check_branch
          %179 = sbr.rel (%p177) target = $region20
        $region19: #{_forward_impl.1} parent=11 // pred_region
          _
        $region20: #{_forward_impl.1} parent=11 // pred_fallthru
          _
        // Predicated region
        $region21: #{_forward_impl.1} parent=11 // pred_check
          %p180 = pneg %p102
        $region22: #{_forward_impl.1} parent=11 // pred_check_branch
          %182 = sbr.rel (%p180) target = $region24
        $region23: #{_forward_impl.1} parent=11 // pred_region
          %s184 = ssub.s32 2048, 2048
          %185 = vsyncadd [#allocation5], %s184
          %s186 = sshll.u32 [#allocation4], 4
          %s187 = int_to_ptr.vmem [resolvable:$true] %s186
          %192 = dma.hbm_to_vmem [thread:$0]  %s3, 2048, %s187, [#allocation5], 128, 128, 8
        $region24: #{_forward_impl.1} parent=11 // pred_fallthru
          _
        // Predicated region
        $region25: #{_forward_impl.1} parent=11 // pred_check
          %p193 = pneg %p123
        $region26: #{_forward_impl.1} parent=11 // pred_check_branch
          %195 = sbr.rel (%p193) target = $region28
        $region27: #{_forward_impl.1} parent=11 // pred_region
          _
        $region28: #{_forward_impl.1} parent=11 // pred_fallthru
          _
      $region12: #{_forward_impl.1} parent=5 // pred_fallthru
        _
      %p196 = scmp.lt.s32.totalorder %s13, 2
      // Predicated region
      $region29: #{_forward_impl.1} parent=5 // pred_check
        %p197 = pneg %p196
      $region30: #{_forward_impl.1} parent=5 // pred_check_branch
        %199 = sbr.rel (%p197) target = $region32
      $region31: #{_forward_impl.1} parent=5 // pred_region
        // Predicated region
        $region33: #{_forward_impl.1} parent=31 // pred_check
          %p200 = pneg %p33
        $region34: #{_forward_impl.1} parent=31 // pred_check_branch
          %202 = sbr.rel (%p200) target = $region36
        $region35: #{_forward_impl.1} parent=31 // pred_region
          %s203 = smul.u32 2, %s13
          %p204 = scmp.lt.s32.totalorder %s203, 3
          %s205 = scalar_select %p204, %s203, 3
          %s206 = smul.addr %s205, 8
          %s207 = scalar_lea.vmem %s0, %s206
          %s208 = smul.u32 2, %s13
        $region36: #{_forward_impl.1} parent=31 // pred_fallthru
          _
      $region32: #{_forward_impl.1} parent=5 // pred_fallthru
        _
      %p209 = scmp.le.s32.totalorder 1, %s13
      %p210 = scmp.lt.s32.totalorder %s13, 3
      %p211 = pnand %p209, %p210
      %p212 = pneg %p211
      // Predicated region
      $region37: #{_forward_impl.1} parent=5 // pred_check
        _
      $region38: #{_forward_impl.1} parent=5 // pred_check_branch
        %214 = sbr.rel (%p211) target = $region40
      $region39: #{_forward_impl.1} parent=5 // pred_region
        %s215 = ssub.s32 %s13, 1
        // Predicated region
        $region41: #{_forward_impl.1} parent=39 // pred_check
          %p216 = pneg %p60
        $region42: #{_forward_impl.1} parent=39 // pred_check_branch
          %218 = sbr.rel (%p216) target = $region44
        $region43: #{_forward_impl.1} parent=39 // pred_region
          %219 = dma.done [#allocation3], 2048
        $region44: #{_forward_impl.1} parent=39 // pred_fallthru
          _
        // Predicated region
        $region45: #{_forward_impl.1} parent=39 // pred_check
          %p220 = pneg %p102
        $region46: #{_forward_impl.1} parent=39 // pred_check_branch
          %222 = sbr.rel (%p220) target = $region48
        $region47: #{_forward_impl.1} parent=39 // pred_region
          %223 = dma.done [#allocation5], 2048
        $region48: #{_forward_impl.1} parent=39 // pred_fallthru
          _
        %s224 = smul.u32 2, %s18
        %p225 = scmp.lt.s32.totalorder %s224, 3
        %s226 = scalar_select %p225, %s224, 3
        %s227 = smul.addr %s226, 8
        %s228 = scalar_lea.vmem %s0, %s227
        %p229 = pneg %p39
        %p230 = pneg %p36
        %p231 = pneg %p60
        %p232 = pneg %p57
        %p233 = pneg %p81
        %p234 = pneg %p78
        %p235 = pneg %p102
        %p236 = pneg %p99
        %p237 = pneg %p123
        %p238 = pneg %p120
        %p239 = pneg %p149
        %p240 = pneg %p146
        %s241 = smul.u32 2, %s18
        %p242 = scmp.lt.s32.totalorder %s241, 3
        %s243 = scalar_select %p242, %s241, 3
        %s244 = smul.addr %s243, 8
        %s245 = scalar_lea.vmem %s5, %s244
        %s246 = smul.u32 2, %s18
        %p247 = scmp.lt.s32.totalorder %s246, 3
        %s248 = scalar_select %p247, %s246, 3
        %s249 = smul.addr %s248, 8
        %s250 = scalar_lea.vmem %s0, %s249
        %s251 = smul.u32 2, %s18
        %s252 = smul.u32 2, %s18
        %p253 = scmp.lt.s32.totalorder %s252, 3
        %s254 = scalar_select %p253, %s252, 3
        %s255 = smul.addr %s254, 8
        %s256 = scalar_lea.vmem %s5, %s255
        %s257 = smul.u32 2, %s18
        %v258 = vld [vmem:[%s250] sm:$0xff]
        %v259 = vld [vmem:[%s250 + $0x8] sm:$0xff]
        %v260 = vld [vmem:[#allocation2] sm:$0xff]
        %v261 = vld [vmem:[#allocation2 + $0x8] sm:$0xff]
        %v262 = vld [vmem:[#allocation2 + $0x10] sm:$0xff]
        %v263 = vld [vmem:[#allocation2 + $0x18] sm:$0xff]
        %v264 = vld [vmem:[#allocation2 + $0x20] sm:$0xff]
        %v265 = vld [vmem:[#allocation2 + $0x28] sm:$0xff]
        %v266 = vld [vmem:[#allocation2 + $0x30] sm:$0xff]
        %v267 = vld [vmem:[#allocation2 + $0x38] sm:$0xff]
        %v268 = vld [vmem:[#allocation2 + $0x40] sm:$0xff]
        %v269 = vld [vmem:[#allocation2 + $0x48] sm:$0xff]
        %v270 = vld [vmem:[#allocation2 + $0x50] sm:$0xff]
        %v271 = vld [vmem:[#allocation2 + $0x58] sm:$0xff]
        %v272 = vld [vmem:[#allocation2 + $0x60] sm:$0xff]
        %v273 = vld [vmem:[#allocation2 + $0x68] sm:$0xff]
        %v274 = vld [vmem:[#allocation2 + $0x70] sm:$0xff]
        %v275 = vld [vmem:[#allocation2 + $0x78] sm:$0xff]
        %v276 = vld [vmem:[%s2] sm:$0x1]
        %v278 = vlaneseq
        %v279 = vshrl.u32 %v278, 7
        %v280 = vsub.s32 0, %v279
        %v281 = vrot.slane %v276, %v280
        %283 = vmatprep.subr.mxu0 0.0
        %284 = vmatpush1.msra.mxu0 %v260
        %285 = vmatprep.subr.mxu0 0.0
        %286 = vmatpush1.msra.mxu0 %v261
        %287 = vmatprep.subr.mxu0 0.0
        %288 = vmatpush1.msra.mxu0 %v262
        %289 = vmatprep.subr.mxu0 0.0
        %290 = vmatpush1.msra.mxu0 %v263
        %291 = vmatprep.subr.mxu0 0.0
        %292 = vmatpush1.msra.mxu0 %v264
        %293 = vmatprep.subr.mxu0 0.0
        %294 = vmatpush1.msra.mxu0 %v265
        %295 = vmatprep.subr.mxu0 0.0
        %296 = vmatpush1.msra.mxu0 %v266
        %297 = vmatprep.subr.mxu0 0.0
        %298 = vmatpush1.msra.mxu0 %v267
        %299 = vmatprep.subr.mxu0 0.0
        %300 = vmatpush1.msra.mxu0 %v268
        %301 = vmatprep.subr.mxu0 0.0
        %302 = vmatpush1.msra.mxu0 %v269
        %303 = vmatprep.subr.mxu0 0.0
        %304 = vmatpush1.msra.mxu0 %v270
        %305 = vmatprep.subr.mxu0 0.0
        %306 = vmatpush1.msra.mxu0 %v271
        %307 = vmatprep.subr.mxu0 0.0
        %308 = vmatpush1.msra.mxu0 %v272
        %309 = vmatprep.subr.mxu0 0.0
        %310 = vmatpush1.msra.mxu0 %v273
        %311 = vmatprep.subr.mxu0 0.0
        %312 = vmatpush1.msra.mxu0 %v274
        %313 = vmatprep.subr.mxu0 0.0
        %314 = vmatpush1.msra.mxu0 %v275
        %315 = vmatprep.subr.mxu0 0.0
        %316 = vmatpush1.msra.mxu0 0.0
        %317 = vmatprep.subr.mxu0 0.0
        %318 = vmatpush1.msra.mxu0 0.0
        %319 = vmatprep.subr.mxu0 0.0
        %320 = vmatpush1.msra.mxu0 0.0
        %321 = vmatprep.subr.mxu0 0.0
        %322 = vmatpush1.msra.mxu0 0.0
        %323 = vmatprep.subr.mxu0 0.0
        %324 = vmatpush1.msra.mxu0 0.0
        %325 = vmatprep.subr.mxu0 0.0
        %326 = vmatpush1.msra.mxu0 0.0
        %327 = vmatprep.subr.mxu0 0.0
        %328 = vmatpush1.msra.mxu0 0.0
        %329 = vmatprep.subr.mxu0 0.0
        %330 = vmatpush1.msra.mxu0 0.0
        %331 = vmatprep.subr.mxu0 0.0
        %332 = vmatpush1.msra.mxu0 0.0
        %333 = vmatprep.subr.mxu0 0.0
        %334 = vmatpush1.msra.mxu0 0.0
        %335 = vmatprep.subr.mxu0 0.0
        %336 = vmatpush1.msra.mxu0 0.0
        %337 = vmatprep.subr.mxu0 0.0
        %338 = vmatpush1.msra.mxu0 0.0
        %339 = vmatprep.subr.mxu0 0.0
        %340 = vmatpush1.msra.mxu0 0.0
        %341 = vmatprep.subr.mxu0 0.0
        %342 = vmatpush1.msra.mxu0 0.0
        %343 = vmatprep.subr.mxu0 0.0
        %344 = vmatpush1.msra.mxu0 0.0
        %345 = vmatprep.subr.mxu0 0.0
        %346 = vmatpush1.msra.mxu0 0.0
        %347 = vmatprep.mubr.f32.mxu0 0.0
        %348 = vmatmul.mubr.f32.gmra.mrb[0].mxu0 %v258
        %v349 = vpop.f32.mrb[0].mxu0
        %v350 = vadd.f32 %v281, %v349
        %v351 = vpop.f32.mrb[0].mxu0
        %352 = vmatprep.mubr.f32.mxu0 0.0
        %353 = vmatmul.mubr.f32.gmra.mrb[0].mxu0 %v259
        %v354 = vpop.f32.mrb[0].mxu0
        %v355 = vadd.f32 %v281, %v354
        %v356 = vpop.f32.mrb[0].mxu0
        %357 = vdwg.mxu0
        %v358 = vmax.f32 %v350, 0.0
        %v359 = vmax.f32 %v355, 0.0
        %v360 = vld [vmem:[#allocation4] sm:$0xff]
        %v361 = vld [vmem:[#allocation4 + $0x8] sm:$0xff]
        %v362 = vld [vmem:[#allocation4 + $0x10] sm:$0xff]
        %v363 = vld [vmem:[#allocation4 + $0x18] sm:$0xff]
        %v364 = vld [vmem:[#allocation4 + $0x20] sm:$0xff]
        %v365 = vld [vmem:[#allocation4 + $0x28] sm:$0xff]
        %v366 = vld [vmem:[#allocation4 + $0x30] sm:$0xff]
        %v367 = vld [vmem:[#allocation4 + $0x38] sm:$0xff]
        %v368 = vld [vmem:[#allocation4 + $0x40] sm:$0xff]
        %v369 = vld [vmem:[#allocation4 + $0x48] sm:$0xff]
        %v370 = vld [vmem:[#allocation4 + $0x50] sm:$0xff]
        %v371 = vld [vmem:[#allocation4 + $0x58] sm:$0xff]
        %v372 = vld [vmem:[#allocation4 + $0x60] sm:$0xff]
        %v373 = vld [vmem:[#allocation4 + $0x68] sm:$0xff]
        %v374 = vld [vmem:[#allocation4 + $0x70] sm:$0xff]
        %v375 = vld [vmem:[#allocation4 + $0x78] sm:$0xff]
        %v376 = vld [vmem:[%s4] sm:$0x1]
        %v378 = vlaneseq
        %v379 = vshrl.u32 %v378, 7
        %v380 = vsub.s32 0, %v379
        %v381 = vrot.slane %v376, %v380
        %383 = vmatprep.subr.mxu0 0.0
        %384 = vmatpush1.msra.mxu0 %v360
        %385 = vmatprep.subr.mxu0 0.0
        %386 = vmatpush1.msra.mxu0 %v361
        %387 = vmatprep.subr.mxu0 0.0
        %388 = vmatpush1.msra.mxu0 %v362
        %389 = vmatprep.subr.mxu0 0.0
        %390 = vmatpush1.msra.mxu0 %v363
        %391 = vmatprep.subr.mxu0 0.0
        %392 = vmatpush1.msra.mxu0 %v364
        %393 = vmatprep.subr.mxu0 0.0
        %394 = vmatpush1.msra.mxu0 %v365
        %395 = vmatprep.subr.mxu0 0.0
        %396 = vmatpush1.msra.mxu0 %v366
        %397 = vmatprep.subr.mxu0 0.0
        %398 = vmatpush1.msra.mxu0 %v367
        %399 = vmatprep.subr.mxu0 0.0
        %400 = vmatpush1.msra.mxu0 %v368
        %401 = vmatprep.subr.mxu0 0.0
        %402 = vmatpush1.msra.mxu0 %v369
        %403 = vmatprep.subr.mxu0 0.0
        %404 = vmatpush1.msra.mxu0 %v370
        %405 = vmatprep.subr.mxu0 0.0
        %406 = vmatpush1.msra.mxu0 %v371
        %407 = vmatprep.subr.mxu0 0.0
        %408 = vmatpush1.msra.mxu0 %v372
        %409 = vmatprep.subr.mxu0 0.0
        %410 = vmatpush1.msra.mxu0 %v373
        %411 = vmatprep.subr.mxu0 0.0
        %412 = vmatpush1.msra.mxu0 %v374
        %413 = vmatprep.subr.mxu0 0.0
        %414 = vmatpush1.msra.mxu0 %v375
        %415 = vmatprep.subr.mxu0 0.0
        %416 = vmatpush1.msra.mxu0 0.0
        %417 = vmatprep.subr.mxu0 0.0
        %418 = vmatpush1.msra.mxu0 0.0
        %419 = vmatprep.subr.mxu0 0.0
        %420 = vmatpush1.msra.mxu0 0.0
        %421 = vmatprep.subr.mxu0 0.0
        %422 = vmatpush1.msra.mxu0 0.0
        %423 = vmatprep.subr.mxu0 0.0
        %424 = vmatpush1.msra.mxu0 0.0
        %425 = vmatprep.subr.mxu0 0.0
        %426 = vmatpush1.msra.mxu0 0.0
        %427 = vmatprep.subr.mxu0 0.0
        %428 = vmatpush1.msra.mxu0 0.0
        %429 = vmatprep.subr.mxu0 0.0
        %430 = vmatpush1.msra.mxu0 0.0
        %431 = vmatprep.subr.mxu0 0.0
        %432 = vmatpush1.msra.mxu0 0.0
        %433 = vmatprep.subr.mxu0 0.0
        %434 = vmatpush1.msra.mxu0 0.0
        %435 = vmatprep.subr.mxu0 0.0
        %436 = vmatpush1.msra.mxu0 0.0
        %437 = vmatprep.subr.mxu0 0.0
        %438 = vmatpush1.msra.mxu0 0.0
        %439 = vmatprep.subr.mxu0 0.0
        %440 = vmatpush1.msra.mxu0 0.0
        %441 = vmatprep.subr.mxu0 0.0
        %442 = vmatpush1.msra.mxu0 0.0
        %443 = vmatprep.subr.mxu0 0.0
        %444 = vmatpush1.msra.mxu0 0.0
        %445 = vmatprep.subr.mxu0 0.0
        %446 = vmatpush1.msra.mxu0 0.0
        %447 = vmatprep.mubr.f32.mxu0 0.0
        %448 = vmatmul.mubr.f32.gmra.mrb[0].mxu0 %v358
        %v449 = vpop.f32.mrb[0].mxu0
        %v450 = vadd.f32 %v381, %v449
        %v451 = vpop.f32.mrb[0].mxu0
        %452 = vmatprep.mubr.f32.mxu0 0.0
        %453 = vmatmul.mubr.f32.gmra.mrb[0].mxu0 %v359
        %v454 = vpop.f32.mrb[0].mxu0
        %v455 = vadd.f32 %v381, %v454
        %v456 = vpop.f32.mrb[0].mxu0
        %457 = vdwg.mxu0
        %458 = vst [vmem:[%s256] sm:$0xff] %v450
        %459 = vst [vmem:[%s256 + $0x8] sm:$0xff] %v455
        %s460 = smul.u32 2, %s18
        %p461 = scmp.lt.s32.totalorder %s460, 3
        %s462 = scalar_select %p461, %s460, 3
        %s463 = smul.addr %s462, 8
        %s464 = scalar_lea.vmem %s5, %s463
        // Predicated region
        $region49: #{_forward_impl.1} parent=39 // pred_check
          %p465 = pneg %p146
        $region50: #{_forward_impl.1} parent=39 // pred_check_branch
          %467 = sbr.rel (%p465) target = $region52
        $region51: #{_forward_impl.1} parent=39 // pred_region
          %s468 = smul.u32 2, %s18
        $region52: #{_forward_impl.1} parent=39 // pred_fallthru
          _
      $region40: #{_forward_impl.1} parent=5 // pred_fallthru
        _
      %p469 = scmp.le.s32.totalorder 2, %s13
      // Predicated region
      $region53: #{_forward_impl.1} parent=5 // pred_check
        %p470 = pneg %p469
      $region54: #{_forward_impl.1} parent=5 // pred_check_branch
        %472 = sbr.rel (%p470) target = $region56
      $region55: #{_forward_impl.1} parent=5 // pred_region
        %s473 = ssub.s32 %s13, 2
        // Predicated region
        $region57: #{_forward_impl.1} parent=55 // pred_check
          %p474 = pneg %p152
        $region58: #{_forward_impl.1} parent=55 // pred_check_branch
          %476 = sbr.rel (%p474) target = $region60
        $region59: #{_forward_impl.1} parent=55 // pred_region
          %s477 = smul.u32 2, %s19
          %p478 = scmp.lt.s32.totalorder %s477, 3
          %s479 = scalar_select %p478, %s477, 3
          %s480 = smul.addr %s479, 8
          %s481 = scalar_lea.vmem %s5, %s480
        $region60: #{_forward_impl.1} parent=55 // pred_fallthru
          _
      $region56: #{_forward_impl.1} parent=5 // pred_fallthru
        _
    $region6: #{_forward_impl.1} parent=1 // loop_footer
      %s17 = sadd.s32 1, %s13
    $region7: #{_forward_impl.1} parent=1 // loop_footer_branch
      %12 = sbr.rel target = $region3
    $region8: #{_forward_impl.1} parent=1 // loop_exit
      _
    %482 = vsyncpa [#allocation3], 1
    %s483 = scalar_lea.sflag [#allocation3], 1
    %484 = vsyncpa %s483, 1
    %485 = vsyncpa [#allocation5], 1

// kernel: _forward_impl.1
$region0: #{_forward_impl.1}
  #allocation0 [shape = 'u32[]', space=smem, size = 0x4, offset = 0x4, fixed_abs, tag = 'smem constant byte address 0x4 - core index']
  #allocation1 [shape = 'u32[144,128]{1,0:T(1,128)}', space=vmem, size = 0x12000, scoped, tag = 'internal scratch']
  %s0 = inlined_call_operand.vmem [shape: f32[32,128], index: 0, kind: input, shape index: {}]
  %s1 = inlined_call_operand.hbm [shape: f32[128,128], index: 1, kind: input, shape index: {}]
  %s2 = inlined_call_operand.vmem [shape: f32[1,128], index: 2, kind: input, shape index: {}]
  %s3 = inlined_call_operand.hbm [shape: f32[128,128], index: 3, kind: input, shape index: {}]
  %s4 = inlined_call_operand.vmem [shape: f32[1,128], index: 4, kind: input, shape index: {}]
  %s5 = inlined_call_operand.vmem [shape: f32[32,128], index: 5, kind: output, shape index: {}]
  %s6 = sld [smem:[#allocation0]]
  $region61: #{_forward_impl.1} parent=0
    _
  %s8 = ssub.s32 1, %s6
  %s9 = scalar_select 0, %s8, %s6
  $region1: #{_forward_impl.1} parent=0
    #allocation2 [shape = 'u8[65536]{0}', space=vmem, size = 0x10000, scoped, tag = 'input window, operand 1, single buffered']
    #allocation3 [shape = 's32[2]{0}', space=sflag, size = 0x8, scoped, tag = 'scoped memory for _forward_impl.1']
    #allocation4 [shape = 'u8[65536]{0}', space=vmem, size = 0x10000, scoped, tag = 'input window, operand 3, single buffered']
    #allocation5 [shape = 's32[1]{0}', space=sflag, size = 0x4, scoped, tag = 'scoped memory for _forward_impl.1']
    %10 = vsyncpa [#allocation3], 0
    %11 = vsyncpa [#allocation5], 0
    loop: start=0, step=1, limit=4
    $region2: #{_forward_impl.1} parent=1 // loop_pre_header
      _
    $region3: #{_forward_impl.1} parent=1 // loop_header
      %s13 = sphi 0, %s17
      %p14 = scmp.ge.s32.totalorder %s13, 4
      %s23 = sphi 0, %s25
      %s26 = sphi 0, %s23
      %s27 = sphi 0, %s26
      %s43 = sphi 0, %s27
      %s47 = sphi 0, %s47
      %s49 = sphi 0, %s47
      %s50 = sphi 0, %s49
      %s64 = sphi 0, %s50
      %s68 = sphi 0, %s68
      %s70 = sphi 0, %s68
      %s71 = sphi 0, %s70
      %s85 = sphi 0, %s71
      %s89 = sphi 0, %s89
      %s91 = sphi 0, %s89
      %s92 = sphi 0, %s91
      %s106 = sphi 0, %s92
      %s110 = sphi 0, %s110
      %s112 = sphi 0, %s110
      %s113 = sphi 0, %s112
      %s127 = sphi 0, %s113
      %s133 = sphi 0, %s135
      %s136 = sphi 0, %s133
      %s137 = sphi 0, %s136
      %s153 = sphi 0, %s137
    $region4: #{_forward_impl.1} parent=1 // loop_header_branch
      %16 = sbr.rel (%p14) target = $region8
    $region5: #{_forward_impl.1} parent=1 // loop_body
      %s18 = ssub.s32 %s13, 1
      %s19 = ssub.s32 %s13, 2
      %s20 = sadd.s32 %s13, 1
      %s21 = ssub.s32 %s13, %s20
      %p22 = scmp.eq.s32.totalorder %s21, 0
      %s24 = sadd.s32 %s23, 1
      %s25 = scalar_select %p22, %s23, %s24
      %p28 = pneg %p22
      %p29 = scmp.eq.s32.totalorder %s13, 1
      %p30 = por %p28, %p29
      %p31 = scmp.ne.s32.totalorder %s23, %s26
      %p32 = scmp.eq.s32.totalorder %s13, 0
      %p33 = por %p31, %p32
      %p34 = scmp.ne.s32.totalorder %s23, %s26
      %p35 = scmp.eq.s32.totalorder %s18, 1
      %p36 = por %p34, %p35
      %p37 = scmp.ne.s32.totalorder %s26, %s27
      %p38 = scmp.eq.s32.totalorder %s18, 0
      %p39 = por %p37, %p38
      %p40 = scmp.ne.s32.totalorder %s26, %s27
      %p41 = scmp.eq.s32.totalorder %s19, 1
      %p42 = por %p40, %p41
      %p44 = scmp.ne.s32.totalorder %s27, %s43
      %p45 = scmp.eq.s32.totalorder %s19, 0
      %p46 = por %p44, %p45
      %s48 = sadd.s32 %s47, 1
      %p51 = scmp.eq.s32.totalorder %s13, 1
      %p52 = scmp.ne.s32.totalorder %s47, %s49
      %p53 = scmp.eq.s32.totalorder %s13, 0
      %p54 = por %p52, %p53
      %p55 = scmp.ne.s32.totalorder %s47, %s49
      %p56 = scmp.eq.s32.totalorder %s18, 1
      %p57 = por %p55, %p56
      %p58 = scmp.ne.s32.totalorder %s49, %s50
      %p59 = scmp.eq.s32.totalorder %s18, 0
      %p60 = por %p58, %p59
      %p61 = scmp.ne.s32.totalorder %s49, %s50
      %p62 = scmp.eq.s32.totalorder %s19, 1
      %p63 = por %p61, %p62
      %p65 = scmp.ne.s32.totalorder %s50, %s64
      %p66 = scmp.eq.s32.totalorder %s19, 0
      %p67 = por %p65, %p66
      %s69 = sadd.s32 %s68, 1
      %p72 = scmp.eq.s32.totalorder %s13, 1
      %p73 = scmp.ne.s32.totalorder %s68, %s70
      %p74 = scmp.eq.s32.totalorder %s13, 0
      %p75 = por %p73, %p74
      %p76 = scmp.ne.s32.totalorder %s68, %s70
      %p77 = scmp.eq.s32.totalorder %s18, 1
      %p78 = por %p76, %p77
      %p79 = scmp.ne.s32.totalorder %s70, %s71
      %p80 = scmp.eq.s32.totalorder %s18, 0
      %p81 = por %p79, %p80
      %p82 = scmp.ne.s32.totalorder %s70, %s71
      %p83 = scmp.eq.s32.totalorder %s19, 1
      %p84 = por %p82, %p83
      %p86 = scmp.ne.s32.totalorder %s71, %s85
      %p87 = scmp.eq.s32.totalorder %s19, 0
      %p88 = por %p86, %p87
      %s90 = sadd.s32 %s89, 1
      %p93 = scmp.eq.s32.totalorder %s13, 1
      %p94 = scmp.ne.s32.totalorder %s89, %s91
      %p95 = scmp.eq.s32.totalorder %s13, 0
      %p96 = por %p94, %p95
      %p97 = scmp.ne.s32.totalorder %s89, %s91
      %p98 = scmp.eq.s32.totalorder %s18, 1
      %p99 = por %p97, %p98
      %p100 = scmp.ne.s32.totalorder %s91, %s92
      %p101 = scmp.eq.s32.totalorder %s18, 0
      %p102 = por %p100, %p101
      %p103 = scmp.ne.s32.totalorder %s91, %s92
      %p104 = scmp.eq.s32.totalorder %s19, 1
      %p105 = por %p103, %p104
      %p107 = scmp.ne.s32.totalorder %s92, %s106
      %p108 = scmp.eq.s32.totalorder %s19, 0
      %p109 = por %p107, %p108
      %s111 = sadd.s32 %s110, 1
      %p114 = scmp.eq.s32.totalorder %s13, 1
      %p115 = scmp.ne.s32.totalorder %s110, %s112
      %p116 = scmp.eq.s32.totalorder %s13, 0
      %p117 = por %p115, %p116
      %p118 = scmp.ne.s32.totalorder %s110, %s112
      %p119 = scmp.eq.s32.totalorder %s18, 1
      %p120 = por %p118, %p119
      %p121 = scmp.ne.s32.totalorder %s112, %s113
      %p122 = scmp.eq.s32.totalorder %s18, 0
      %p123 = por %p121, %p122
      %p124 = scmp.ne.s32.totalorder %s112, %s113
      %p125 = scmp.eq.s32.totalorder %s19, 1
      %p126 = por %p124, %p125
      %p128 = scmp.ne.s32.totalorder %s113, %s127
      %p129 = scmp.eq.s32.totalorder %s19, 0
      %p130 = por %p128, %p129
      %s131 = ssub.s32 %s13, %s20
      %p132 = scmp.eq.s32.totalorder %s131, 0
      %s134 = sadd.s32 %s133, 1
      %s135 = scalar_select %p132, %s133, %s134
      %p138 = pneg %p132
      %p139 = scmp.eq.s32.totalorder %s13, 1
      %p140 = por %p138, %p139
      %p141 = scmp.ne.s32.totalorder %s133, %s136
      %p142 = scmp.eq.s32.totalorder %s13, 0
      %p143 = por %p141, %p142
      %p144 = scmp.ne.s32.totalorder %s133, %s136
      %p145 = scmp.eq.s32.totalorder %s18, 1
      %p146 = por %p144, %p145
      %p147 = scmp.ne.s32.totalorder %s136, %s137
      %p148 = scmp.eq.s32.totalorder %s18, 0
      %p149 = por %p147, %p148
      %p150 = scmp.ne.s32.totalorder %s136, %s137
      %p151 = scmp.eq.s32.totalorder %s19, 1
      %p152 = por %p150, %p151
      %p154 = scmp.ne.s32.totalorder %s137, %s153
      %p155 = scmp.eq.s32.totalorder %s19, 0
      %p156 = por %p154, %p155
      %p157 = scmp.le.s32.totalorder 1, %s13
      %p158 = scmp.lt.s32.totalorder %s13, 3
      %p159 = pnand %p157, %p158
      %p160 = pneg %p159
      // Predicated region
      $region9: #{_forward_impl.1} parent=5 // pred_check
        _
      $region10: #{_forward_impl.1} parent=5 // pred_check_branch
        %162 = sbr.rel (%p159) target = $region12
      $region11: #{_forward_impl.1} parent=5 // pred_region
        %s163 = ssub.s32 %s13, 1
        // Predicated region
        $region13: #{_forward_impl.1} parent=11 // pred_check
          %p164 = pneg %p60
        $region14: #{_forward_impl.1} parent=11 // pred_check_branch
          %166 = sbr.rel (%p164) target = $region16
        $region15: #{_forward_impl.1} parent=11 // pred_region
          %s168 = ssub.s32 2048, 2048
          %169 = vsyncadd [#allocation3], %s168
          %s170 = sshll.u32 [#allocation2], 4
          %s171 = int_to_ptr.vmem [resolvable:$true] %s170
          %176 = dma.hbm_to_vmem [thread:$0]  %s1, 2048, %s171, [#allocation3], 128, 128, 8
        $region16: #{_forward_impl.1} parent=11 // pred_fallthru
          _
        // Predicated region
        $region17: #{_forward_impl.1} parent=11 // pred_check
          %p177 = pneg %p81
        $region18: #{_forward_impl.1} parent=11 // pred_check_branch
          %179 = sbr.rel (%p177) target = $region20
        $region19: #{_forward_impl.1} parent=11 // pred_region
          _
        $region20: #{_forward_impl.1} parent=11 // pred_fallthru
          _
        // Predicated region
        $region21: #{_forward_impl.1} parent=11 // pred_check
          %p180 = pneg %p102
        $region22: #{_forward_impl.1} parent=11 // pred_check_branch
          %182 = sbr.rel (%p180) target = $region24
        $region23: #{_forward_impl.1} parent=11 // pred_region
          %s184 = ssub.s32 2048, 2048
          %185 = vsyncadd [#allocation5], %s184
          %s186 = sshll.u32 [#allocation4], 4
          %s187 = int_to_ptr.vmem [resolvable:$true] %s186
          %192 = dma.hbm_to_vmem [thread:$0]  %s3, 2048, %s187, [#allocation5], 128, 128, 8
        $region24: #{_forward_impl.1} parent=11 // pred_fallthru
          _
        // Predicated region
        $region25: #{_forward_impl.1} parent=11 // pred_check
          %p193 = pneg %p123
        $region26: #{_forward_impl.1} parent=11 // pred_check_branch
          %195 = sbr.rel (%p193) target = $region28
        $region27: #{_forward_impl.1} parent=11 // pred_region
          _
        $region28: #{_forward_impl.1} parent=11 // pred_fallthru
          _
      $region12: #{_forward_impl.1} parent=5 // pred_fallthru
        _
      %p196 = scmp.lt.s32.totalorder %s13, 2
      // Predicated region
      $region29: #{_forward_impl.1} parent=5 // pred_check
        %p197 = pneg %p196
      $region30: #{_forward_impl.1} parent=5 // pred_check_branch
        %199 = sbr.rel (%p197) target = $region32
      $region31: #{_forward_impl.1} parent=5 // pred_region
        // Predicated region
        $region33: #{_forward_impl.1} parent=31 // pred_check
          %p200 = pneg %p33
        $region34: #{_forward_impl.1} parent=31 // pred_check_branch
          %202 = sbr.rel (%p200) target = $region36
        $region35: #{_forward_impl.1} parent=31 // pred_region
          %s203 = smul.u32 2, %s13
          %p204 = scmp.lt.s32.totalorder %s203, 3
          %s205 = scalar_select %p204, %s203, 3
          %s206 = smul.addr %s205, 8
          %s207 = scalar_lea.vmem %s0, %s206
          %s208 = smul.u32 2, %s13
        $region36: #{_forward_impl.1} parent=31 // pred_fallthru
          _
      $region32: #{_forward_impl.1} parent=5 // pred_fallthru
        _
      %p209 = scmp.le.s32.totalorder 1, %s13
      %p210 = scmp.lt.s32.totalorder %s13, 3
      %p211 = pnand %p209, %p210
      %p212 = pneg %p211
      // Predicated region
      $region37: #{_forward_impl.1} parent=5 // pred_check
        _
      $region38: #{_forward_impl.1} parent=5 // pred_check_branch
        %214 = sbr.rel (%p211) target = $region40
      $region39: #{_forward_impl.1} parent=5 // pred_region
        %s215 = ssub.s32 %s13, 1
        // Predicated region
        $region41: #{_forward_impl.1} parent=39 // pred_check
          %p216 = pneg %p60
        $region42: #{_forward_impl.1} parent=39 // pred_check_branch
          %218 = sbr.rel (%p216) target = $region44
        $region43: #{_forward_impl.1} parent=39 // pred_region
          %219 = dma.done [#allocation3], 2048
        $region44: #{_forward_impl.1} parent=39 // pred_fallthru
          _
        // Predicated region
        $region45: #{_forward_impl.1} parent=39 // pred_check
          %p220 = pneg %p102
        $region46: #{_forward_impl.1} parent=39 // pred_check_branch
          %222 = sbr.rel (%p220) target = $region48
        $region47: #{_forward_impl.1} parent=39 // pred_region
          %223 = dma.done [#allocation5], 2048
        $region48: #{_forward_impl.1} parent=39 // pred_fallthru
          _
        %s224 = smul.u32 2, %s18
        %p225 = scmp.lt.s32.totalorder %s224, 3
        %s226 = scalar_select %p225, %s224, 3
        %s227 = smul.addr %s226, 8
        %s228 = scalar_lea.vmem %s0, %s227
        %p229 = pneg %p39
        %p230 = pneg %p36
        %p231 = pneg %p60
        %p232 = pneg %p57
        %p233 = pneg %p81
        %p234 = pneg %p78
        %p235 = pneg %p102
        %p236 = pneg %p99
        %p237 = pneg %p123
        %p238 = pneg %p120
        %p239 = pneg %p149
        %p240 = pneg %p146
        %s241 = smul.u32 2, %s18
        %p242 = scmp.lt.s32.totalorder %s241, 3
        %s243 = scalar_select %p242, %s241, 3
        %s244 = smul.addr %s243, 8
        %s245 = scalar_lea.vmem %s5, %s244
        %s246 = smul.u32 2, %s18
        %p247 = scmp.lt.s32.totalorder %s246, 3
        %s248 = scalar_select %p247, %s246, 3
        %s249 = smul.addr %s248, 8
        %s250 = scalar_lea.vmem %s0, %s249
        %s251 = smul.u32 2, %s18
        %s252 = smul.u32 2, %s18
        %p253 = scmp.lt.s32.totalorder %s252, 3
        %s254 = scalar_select %p253, %s252, 3
        %s255 = smul.addr %s254, 8
        %s256 = scalar_lea.vmem %s5, %s255
        %s257 = smul.u32 2, %s18
        %v258 = vld [vmem:[%s250] sm:$0xff]
        %v259 = vld [vmem:[%s250 + $0x8] sm:$0xff]
        %v260 = vld [vmem:[#allocation2] sm:$0xff]
        %v261 = vld [vmem:[#allocation2 + $0x8] sm:$0xff]
        %v262 = vld [vmem:[#allocation2 + $0x10] sm:$0xff]
        %v263 = vld [vmem:[#allocation2 + $0x18] sm:$0xff]
        %v264 = vld [vmem:[#allocation2 + $0x20] sm:$0xff]
        %v265 = vld [vmem:[#allocation2 + $0x28] sm:$0xff]
        %v266 = vld [vmem:[#allocation2 + $0x30] sm:$0xff]
        %v267 = vld [vmem:[#allocation2 + $0x38] sm:$0xff]
        %v268 = vld [vmem:[#allocation2 + $0x40] sm:$0xff]
        %v269 = vld [vmem:[#allocation2 + $0x48] sm:$0xff]
        %v270 = vld [vmem:[#allocation2 + $0x50] sm:$0xff]
        %v271 = vld [vmem:[#allocation2 + $0x58] sm:$0xff]
        %v272 = vld [vmem:[#allocation2 + $0x60] sm:$0xff]
        %v273 = vld [vmem:[#allocation2 + $0x68] sm:$0xff]
        %v274 = vld [vmem:[#allocation2 + $0x70] sm:$0xff]
        %v275 = vld [vmem:[#allocation2 + $0x78] sm:$0xff]
        %v276 = vld [vmem:[%s2] sm:$0x1]
        %v278 = vlaneseq
        %v279 = vshrl.u32 %v278, 7
        %v280 = vsub.s32 0, %v279
        %v281 = vrot.slane %v276, %v280
        %283 = vmatprep.subr.mxu0 0.0
        %284 = vmatpush1.msra.mxu0 %v260
        %285 = vmatprep.subr.mxu0 0.0
        %286 = vmatpush1.msra.mxu0 %v261
        %287 = vmatprep.subr.mxu0 0.0
        %288 = vmatpush1.msra.mxu0 %v262
        %289 = vmatprep.subr.mxu0 0.0
        %290 = vmatpush1.msra.mxu0 %v263
        %291 = vmatprep.subr.mxu0 0.0
        %292 = vmatpush1.msra.mxu0 %v264
        %293 = vmatprep.subr.mxu0 0.0
        %294 = vmatpush1.msra.mxu0 %v265
        %295 = vmatprep.subr.mxu0 0.0
        %296 = vmatpush1.msra.mxu0 %v266
        %297 = vmatprep.subr.mxu0 0.0
        %298 = vmatpush1.msra.mxu0 %v267
        %299 = vmatprep.subr.mxu0 0.0
        %300 = vmatpush1.msra.mxu0 %v268
        %301 = vmatprep.subr.mxu0 0.0
        %302 = vmatpush1.msra.mxu0 %v269
        %303 = vmatprep.subr.mxu0 0.0
        %304 = vmatpush1.msra.mxu0 %v270
        %305 = vmatprep.subr.mxu0 0.0
        %306 = vmatpush1.msra.mxu0 %v271
        %307 = vmatprep.subr.mxu0 0.0
        %308 = vmatpush1.msra.mxu0 %v272
        %309 = vmatprep.subr.mxu0 0.0
        %310 = vmatpush1.msra.mxu0 %v273
        %311 = vmatprep.subr.mxu0 0.0
        %312 = vmatpush1.msra.mxu0 %v274
        %313 = vmatprep.subr.mxu0 0.0
        %314 = vmatpush1.msra.mxu0 %v275
        %315 = vmatprep.subr.mxu0 0.0
        %316 = vmatpush1.msra.mxu0 0.0
        %317 = vmatprep.subr.mxu0 0.0
        %318 = vmatpush1.msra.mxu0 0.0
        %319 = vmatprep.subr.mxu0 0.0
        %320 = vmatpush1.msra.mxu0 0.0
        %321 = vmatprep.subr.mxu0 0.0
        %322 = vmatpush1.msra.mxu0 0.0
        %323 = vmatprep.subr.mxu0 0.0
        %324 = vmatpush1.msra.mxu0 0.0
        %325 = vmatprep.subr.mxu0 0.0
        %326 = vmatpush1.msra.mxu0 0.0
        %327 = vmatprep.subr.mxu0 0.0
        %328 = vmatpush1.msra.mxu0 0.0
        %329 = vmatprep.subr.mxu0 0.0
        %330 = vmatpush1.msra.mxu0 0.0
        %331 = vmatprep.subr.mxu0 0.0
        %332 = vmatpush1.msra.mxu0 0.0
        %333 = vmatprep.subr.mxu0 0.0
        %334 = vmatpush1.msra.mxu0 0.0
        %335 = vmatprep.subr.mxu0 0.0
        %336 = vmatpush1.msra.mxu0 0.0
        %337 = vmatprep.subr.mxu0 0.0
        %338 = vmatpush1.msra.mxu0 0.0
        %339 = vmatprep.subr.mxu0 0.0
        %340 = vmatpush1.msra.mxu0 0.0
        %341 = vmatprep.subr.mxu0 0.0
        %342 = vmatpush1.msra.mxu0 0.0
        %343 = vmatprep.subr.mxu0 0.0
        %344 = vmatpush1.msra.mxu0 0.0
        %345 = vmatprep.subr.mxu0 0.0
        %346 = vmatpush1.msra.mxu0 0.0
        %347 = vmatprep.mubr.f32.mxu0 0.0
        %348 = vmatmul.mubr.f32.gmra.mrb[0].mxu0 %v258
        %v349 = vpop.f32.mrb[0].mxu0
        %v350 = vadd.f32 %v281, %v349
        %v351 = vpop.f32.mrb[0].mxu0
        %352 = vmatprep.mubr.f32.mxu0 0.0
        %353 = vmatmul.mubr.f32.gmra.mrb[0].mxu0 %v259
        %v354 = vpop.f32.mrb[0].mxu0
        %v355 = vadd.f32 %v281, %v354
        %v356 = vpop.f32.mrb[0].mxu0
        %357 = vdwg.mxu0
        %v358 = vmax.f32 %v350, 0.0
        %v359 = vmax.f32 %v355, 0.0
        %v360 = vld [vmem:[#allocation4] sm:$0xff]
        %v361 = vld [vmem:[#allocation4 + $0x8] sm:$0xff]
        %v362 = vld [vmem:[#allocation4 + $0x10] sm:$0xff]
        %v363 = vld [vmem:[#allocation4 + $0x18] sm:$0xff]
        %v364 = vld [vmem:[#allocation4 + $0x20] sm:$0xff]
        %v365 = vld [vmem:[#allocation4 + $0x28] sm:$0xff]
        %v366 = vld [vmem:[#allocation4 + $0x30] sm:$0xff]
        %v367 = vld [vmem:[#allocation4 + $0x38] sm:$0xff]
        %v368 = vld [vmem:[#allocation4 + $0x40] sm:$0xff]
        %v369 = vld [vmem:[#allocation4 + $0x48] sm:$0xff]
        %v370 = vld [vmem:[#allocation4 + $0x50] sm:$0xff]
        %v371 = vld [vmem:[#allocation4 + $0x58] sm:$0xff]
        %v372 = vld [vmem:[#allocation4 + $0x60] sm:$0xff]
        %v373 = vld [vmem:[#allocation4 + $0x68] sm:$0xff]
        %v374 = vld [vmem:[#allocation4 + $0x70] sm:$0xff]
        %v375 = vld [vmem:[#allocation4 + $0x78] sm:$0xff]
        %v376 = vld [vmem:[%s4] sm:$0x1]
        %v378 = vlaneseq
        %v379 = vshrl.u32 %v378, 7
        %v380 = vsub.s32 0, %v379
        %v381 = vrot.slane %v376, %v380
        %383 = vmatprep.subr.mxu0 0.0
        %384 = vmatpush1.msra.mxu0 %v360
        %385 = vmatprep.subr.mxu0 0.0
        %386 = vmatpush1.msra.mxu0 %v361
        %387 = vmatprep.subr.mxu0 0.0
        %388 = vmatpush1.msra.mxu0 %v362
        %389 = vmatprep.subr.mxu0 0.0
        %390 = vmatpush1.msra.mxu0 %v363
        %391 = vmatprep.subr.mxu0 0.0
        %392 = vmatpush1.msra.mxu0 %v364
        %393 = vmatprep.subr.mxu0 0.0
        %394 = vmatpush1.msra.mxu0 %v365
        %395 = vmatprep.subr.mxu0 0.0
        %396 = vmatpush1.msra.mxu0 %v366
        %397 = vmatprep.subr.mxu0 0.0
        %398 = vmatpush1.msra.mxu0 %v367
        %399 = vmatprep.subr.mxu0 0.0
        %400 = vmatpush1.msra.mxu0 %v368
        %401 = vmatprep.subr.mxu0 0.0
        %402 = vmatpush1.msra.mxu0 %v369
        %403 = vmatprep.subr.mxu0 0.0
        %404 = vmatpush1.msra.mxu0 %v370
        %405 = vmatprep.subr.mxu0 0.0
        %406 = vmatpush1.msra.mxu0 %v371
        %407 = vmatprep.subr.mxu0 0.0
        %408 = vmatpush1.msra.mxu0 %v372
        %409 = vmatprep.subr.mxu0 0.0
        %410 = vmatpush1.msra.mxu0 %v373
        %411 = vmatprep.subr.mxu0 0.0
        %412 = vmatpush1.msra.mxu0 %v374
        %413 = vmatprep.subr.mxu0 0.0
        %414 = vmatpush1.msra.mxu0 %v375
        %415 = vmatprep.subr.mxu0 0.0
        %416 = vmatpush1.msra.mxu0 0.0
        %417 = vmatprep.subr.mxu0 0.0
        %418 = vmatpush1.msra.mxu0 0.0
        %419 = vmatprep.subr.mxu0 0.0
        %420 = vmatpush1.msra.mxu0 0.0
        %421 = vmatprep.subr.mxu0 0.0
        %422 = vmatpush1.msra.mxu0 0.0
        %423 = vmatprep.subr.mxu0 0.0
        %424 = vmatpush1.msra.mxu0 0.0
        %425 = vmatprep.subr.mxu0 0.0
        %426 = vmatpush1.msra.mxu0 0.0
        %427 = vmatprep.subr.mxu0 0.0
        %428 = vmatpush1.msra.mxu0 0.0
        %429 = vmatprep.subr.mxu0 0.0
        %430 = vmatpush1.msra.mxu0 0.0
        %431 = vmatprep.subr.mxu0 0.0
        %432 = vmatpush1.msra.mxu0 0.0
        %433 = vmatprep.subr.mxu0 0.0
        %434 = vmatpush1.msra.mxu0 0.0
        %435 = vmatprep.subr.mxu0 0.0
        %436 = vmatpush1.msra.mxu0 0.0
        %437 = vmatprep.subr.mxu0 0.0
        %438 = vmatpush1.msra.mxu0 0.0
        %439 = vmatprep.subr.mxu0 0.0
        %440 = vmatpush1.msra.mxu0 0.0
        %441 = vmatprep.subr.mxu0 0.0
        %442 = vmatpush1.msra.mxu0 0.0
        %443 = vmatprep.subr.mxu0 0.0
        %444 = vmatpush1.msra.mxu0 0.0
        %445 = vmatprep.subr.mxu0 0.0
        %446 = vmatpush1.msra.mxu0 0.0
        %447 = vmatprep.mubr.f32.mxu0 0.0
        %448 = vmatmul.mubr.f32.gmra.mrb[0].mxu0 %v358
        %v449 = vpop.f32.mrb[0].mxu0
        %v450 = vadd.f32 %v381, %v449
        %v451 = vpop.f32.mrb[0].mxu0
        %452 = vmatprep.mubr.f32.mxu0 0.0
        %453 = vmatmul.mubr.f32.gmra.mrb[0].mxu0 %v359
        %v454 = vpop.f32.mrb[0].mxu0
        %v455 = vadd.f32 %v381, %v454
        %v456 = vpop.f32.mrb[0].mxu0
        %457 = vdwg.mxu0
        %458 = vst [vmem:[%s256] sm:$0xff] %v450
        %459 = vst [vmem:[%s256 + $0x8] sm:$0xff] %v455
        %s460 = smul.u32 2, %s18
        %p461 = scmp.lt.s32.totalorder %s460, 3
        %s462 = scalar_select %p461, %s460, 3
        %s463 = smul.addr %s462, 8
        %s464 = scalar_lea.vmem %s5, %s463
        // Predicated region
        $region49: #{_forward_impl.1} parent=39 // pred_check
          %p465 = pneg %p146
        $region50: #{_forward_impl.1} parent=39 // pred_check_branch
          %467 = sbr.rel (%p465) target = $region52
        $region51: #{_forward_impl.1} parent=39 // pred_region
          %s468 = smul.u32 2, %s18
        $region52: #{_forward_impl.1} parent=39 // pred_fallthru
          _
      $region40: #{_forward_impl.1} parent=5 // pred_fallthru
        _
      %p469 = scmp.le.s32.totalorder 2, %s13
      // Predicated region
      $region53: #{_forward_impl.1} parent=5 // pred_check
        %p470 = pneg %p469
      $region54: #{_forward_impl.1} parent=5 // pred_check_branch
        %472 = sbr.rel (%p470) target = $region56
      $region55: #{_forward_impl.1} parent=5 // pred_region
        %s473 = ssub.s32 %s13, 2
        // Predicated region
        $region57: #{_forward_impl.1} parent=55 // pred_check
          %p474 = pneg %p152
        $region58: #{_forward_impl.1} parent=55 // pred_check_branch
          %476 = sbr.rel (%p474) target = $region60
        $region59: #{_forward_impl.1} parent=55 // pred_region
          %s477 = smul.u32 2, %s19
          %p478 = scmp.lt.s32.totalorder %s477, 3
          %s479 = scalar_select %p478, %s477, 3
          %s480 = smul.addr %s479, 8
          %s481 = scalar_lea.vmem %s5, %s480
        $region60: #{_forward_impl.1} parent=55 // pred_fallthru
          _
      $region56: #{_forward_impl.1} parent=5 // pred_fallthru
        _
    $region6: #{_forward_impl.1} parent=1 // loop_footer
      %s17 = sadd.s32 1, %s13
    $region7: #{_forward_impl.1} parent=1 // loop_footer_branch
      %12 = sbr.rel target = $region3
    $region8: #{_forward_impl.1} parent=1 // loop_exit
      _
    %482 = vsyncpa [#allocation3], 1
    %s483 = scalar_lea.sflag [#allocation3], 1
    %484 = vsyncpa %s483, 1
    %485 = vsyncpa [#allocation5], 1

</llo_original>
